<compile_context>
chip_gen: v7x
topology: tpu7x:2x2x1
jax: 0.10.0
libtpu: 0.0.40
codegen_flags: <defaults>
</compile_context>

<pallas_src>
import jax
import jax.numpy as jnp
from jax.experimental import pallas as pl
from jax.experimental.pallas import tpu as pltpu


def _round_up(x: int, m: int) -> int:
    return (x + m - 1) // m * m


def _onehot_embed_kernel(attr_ref, emb_ref, out_ref):
    """Embedding gather expressed as onehot(attr) @ table on the MXU.

    attr_ref: VMEM (B_pad, 1)       int32 label column (padded rows are 0)
    emb_ref : VMEM (L_pad, D_pad)   embedding table (zero-padded)
    out_ref : VMEM (B_pad, D_pad)   gathered embeddings
    """
    B, _ = out_ref.shape
    L = emb_ref.shape[0]

    labels = attr_ref[...]                                    # (B, 1) int32
    iota = jax.lax.broadcasted_iota(jnp.int32, (B, L), 1)     # (B, L) column ids
    onehot = (iota == labels).astype(jnp.float32)             # exact 0/1 selector

    # Single MXU pass; one unmasked lane-dense store of the whole output tile.
    out_ref[...] = jnp.dot(
        onehot,
        emb_ref[...].astype(jnp.float32),
        preferred_element_type=jnp.float32,
    ).astype(out_ref.dtype)


def single_attr_forward(attr: jax.Array, emb_table: jax.Array):
    """JAX/Pallas equivalent of SingleAttr.forward."""
    B = attr.shape[0]
    num_label, context_dim = emb_table.shape

    # Pad to vreg-friendly shapes: sublanes of 8 on B, lanes of 128 on the
    # contraction (num_label) and output (context_dim) axes.
    b_pad = _round_up(B, 8)
    l_pad = _round_up(num_label, 128)
    d_pad = _round_up(context_dim, 128)

    attr_col = attr.astype(jnp.int32).reshape(B, 1)
    if b_pad != B:
        attr_col = jnp.pad(attr_col, ((0, b_pad - B), (0, 0)))

    emb_pad = emb_table
    if (l_pad, d_pad) != (num_label, context_dim):
        emb_pad = jnp.pad(
            emb_table, ((0, l_pad - num_label), (0, d_pad - context_dim))
        )

    out_padded = pl.pallas_call(
        _onehot_embed_kernel,
        out_shape=jax.ShapeDtypeStruct((b_pad, d_pad), emb_table.dtype),
        in_specs=[
            pl.BlockSpec(memory_space=pltpu.MemorySpace.VMEM),  # attr column
            pl.BlockSpec(memory_space=pltpu.MemorySpace.VMEM),  # embedding table
        ],
        out_specs=pl.BlockSpec(memory_space=pltpu.MemorySpace.VMEM),
    )(attr_col, emb_pad)

    crossattn_emb = out_padded[:B, :context_dim]

    # torch.ones(B, 1, dtype=bool) — trivial constant, kept as glue so XLA can
    # fold it into the consumer.
    crossattn_mask = jnp.ones((B, 1), dtype=jnp.bool_)
    return {"crossattn_emb": crossattn_emb, "crossattn_mask": crossattn_mask}


if __name__ == "__main__":
    # Module hyper-params (small, consistent with SingleAttr(context_dim, num_label))
    context_dim = 128
    num_label = 16
    batch = 8

    key = jax.random.PRNGKey(0)
    k_emb, k_attr = jax.random.split(key)

    # nn.Embedding default init: weight ~ N(0, 1), shape (num_label, context_dim)
    emb_table = jax.random.normal(k_emb, (num_label, context_dim), dtype=jnp.float32)
    # attr: integer class labels in [0, num_label)
    attr = jax.random.randint(k_attr, (batch,), 0, num_label, dtype=jnp.int32)

    out = single_attr_forward(attr, emb_table)
    jax.block_until_ready(out)

    # Reference check (plain JAX embedding lookup)
    ref_emb = emb_table[attr]
    assert out["crossattn_emb"].shape == (batch, context_dim)
    assert out["crossattn_emb"].dtype == jnp.float32
    assert out["crossattn_mask"].shape == (batch, 1)
    assert out["crossattn_mask"].dtype == jnp.bool_
    assert jnp.allclose(out["crossattn_emb"], ref_emb)
    assert bool(jnp.all(out["crossattn_mask"]))

    print("KERNEL_OK")
</pallas_src>

<mosaic_0001>
module attributes {stable_mosaic.version = 11 : i64} {
  func.func @_onehot_embed_kernel(%arg0: memref<8x1xi32, #tpu.memory_space<vmem>>, %arg1: memref<128x128xf32, #tpu.memory_space<vmem>>, %arg2: memref<8x128xf32, #tpu.memory_space<vmem>>) attributes {dimension_semantics = [], scalar_prefetch = 0 : i64, scratch_operands = 0 : i64, tpu.core_type = #tpu.core_type<tc>} {
    %c0 = arith.constant 0 : index
    %c0_0 = arith.constant 0 : index
    %0 = vector.load %arg0[%c0, %c0_0] : memref<8x1xi32, #tpu.memory_space<vmem>>, vector<8x1xi32>
    %1 = tpu.iota {dimensions = array<i32: 1>} : vector<8x128xi32>
    %2 = vector.broadcast %0 : vector<8x1xi32> to vector<8x128xi32>
    %3 = arith.cmpi eq, %1, %2 : vector<8x128xi32>
    %4 = arith.extui %3 : vector<8x128xi1> to vector<8x128xi32>
    %5 = arith.sitofp %4 : vector<8x128xi32> to vector<8x128xf32>
    %c0_1 = arith.constant 0 : index
    %c0_2 = arith.constant 0 : index
    %6 = vector.load %arg1[%c0_1, %c0_2] : memref<128x128xf32, #tpu.memory_space<vmem>>, vector<128x128xf32>
    %cst = arith.constant dense<0.000000e+00> : vector<8x128xf32>
    %7 = tpu.matmul %5, %6, %cst {dimension_numbers = #tpu.dot_dimension_numbers<[1], [0], [0], [1], [0, 0, 1, 1], [], []>} : vector<8x128xf32>, vector<128x128xf32>, vector<8x128xf32> -> vector<8x128xf32>
    %c0_3 = arith.constant 0 : index
    %c0_4 = arith.constant 0 : index
    %8 = vector.load %arg2[%c0_3, %c0_4] : memref<8x128xf32, #tpu.memory_space<vmem>>, vector<8x128xf32>
    tpu.vector_store %arg2[%c0_3, %c0_4], %7 {strides = array<i32>} : memref<8x128xf32, #tpu.memory_space<vmem>>, vector<8x128xf32>,
    return
  }
}

</mosaic_0001>

<llo_original>
// kernel: tpu_custom_call.1
$region0: #{tpu_custom_call.1}
  #allocation0 [shape = 'u32[]', space=smem, size = 0x4, offset = 0x4, fixed_abs, tag = 'smem constant byte address 0x4 - core index']
  #allocation1 [shape = 'u32[144,128]{1,0:T(1,128)}', space=vmem, size = 0x12000, scoped, tag = 'internal scratch']
  %s0 = inlined_call_operand.vmem [shape: s32[8,1], index: 0, kind: input, shape index: {}]
  %s1 = inlined_call_operand.hbm [shape: f32[128,128], index: 1, kind: input, shape index: {}]
  %s2 = inlined_call_operand.hbm [shape: f32[8,128], index: 2, kind: output, shape index: {}]
  %s3 = sld [smem:[#allocation0]]
  $region22: #{tpu_custom_call.1} parent=0
    _
  %s5 = ssub.s32 1, %s3
  %s6 = scalar_select 0, %s5, %s3
  $region1: #{tpu_custom_call.1} parent=0
    #allocation2 [shape = 'u8[65536]{0}', space=vmem, size = 0x10000, scoped, tag = 'input window, operand 1, single buffered']
    #allocation3 [shape = 's32[1]{0}', space=sflag, size = 0x4, scoped, tag = 'scoped memory for tpu_custom_call.1']
    #allocation4 [shape = 's32[1]{0}', space=sflag, size = 0x4, scoped, tag = 'scoped memory for tpu_custom_call.1']
    #allocation5 [shape = 'u8[4096]{0}', space=vmem, size = 0x1000, scoped, tag = 'output window, operand 0, single buffered']
    %7 = vsyncpa [#allocation3], 0
    %8 = vsyncpa [#allocation4], 0
    // Predicated region
    $region2: #{tpu_custom_call.1} parent=1 // pred_check
      _
    $region3: #{tpu_custom_call.1} parent=1 // pred_check_branch
      %10 = sbr.rel (0) target = $region5
    $region4: #{tpu_custom_call.1} parent=1 // pred_region
      _
    $region5: #{tpu_custom_call.1} parent=1 // pred_fallthru
      _
    // Predicated region
    $region6: #{tpu_custom_call.1} parent=1 // pred_check
      _
    $region7: #{tpu_custom_call.1} parent=1 // pred_check_branch
      %12 = sbr.rel (0) target = $region9
    $region8: #{tpu_custom_call.1} parent=1 // pred_region
      %s14 = ssub.s32 2048, 2048
      %15 = vsyncadd [#allocation3], %s14
      %s16 = sshll.u32 [#allocation2], 4
      %s17 = int_to_ptr.vmem [resolvable:$true] %s16
      %22 = dma.hbm_to_vmem [thread:$0]  %s1, 2048, %s17, [#allocation3], 128, 128, 8
    $region9: #{tpu_custom_call.1} parent=1 // pred_fallthru
      _
    // Predicated region
    $region10: #{tpu_custom_call.1} parent=1 // pred_check
      _
    $region11: #{tpu_custom_call.1} parent=1 // pred_check_branch
      %24 = sbr.rel (0) target = $region13
    $region12: #{tpu_custom_call.1} parent=1 // pred_region
      %25 = dma.done [#allocation3], 2048
    $region13: #{tpu_custom_call.1} parent=1 // pred_fallthru
      _
    %v26 = vld [vmem:[%s0] sm:$0xff]
    %v27 = vlaneseq
    %v28 = vand.u32 %v27, 127
    %29 = vset.pattern.permute.xlu0 0
    %30 = vperm.xlu0 %29, %v26
    %v31 = vpop.permute.xlu0 %30
    %vm32 = vcmp.eq.s32.totalorder %v28, %v31
    %v33 = vsel %vm32, 1, 0
    %v34 = vcvt.s32.f32 %v33
    %v35 = vld [vmem:[#allocation2] sm:$0xff]
    %v36 = vld [vmem:[#allocation2 + $0x8] sm:$0xff]
    %v37 = vld [vmem:[#allocation2 + $0x10] sm:$0xff]
    %v38 = vld [vmem:[#allocation2 + $0x18] sm:$0xff]
    %v39 = vld [vmem:[#allocation2 + $0x20] sm:$0xff]
    %v40 = vld [vmem:[#allocation2 + $0x28] sm:$0xff]
    %v41 = vld [vmem:[#allocation2 + $0x30] sm:$0xff]
    %v42 = vld [vmem:[#allocation2 + $0x38] sm:$0xff]
    %v43 = vld [vmem:[#allocation2 + $0x40] sm:$0xff]
    %v44 = vld [vmem:[#allocation2 + $0x48] sm:$0xff]
    %v45 = vld [vmem:[#allocation2 + $0x50] sm:$0xff]
    %v46 = vld [vmem:[#allocation2 + $0x58] sm:$0xff]
    %v47 = vld [vmem:[#allocation2 + $0x60] sm:$0xff]
    %v48 = vld [vmem:[#allocation2 + $0x68] sm:$0xff]
    %v49 = vld [vmem:[#allocation2 + $0x70] sm:$0xff]
    %v50 = vld [vmem:[#allocation2 + $0x78] sm:$0xff]
    %51 = vmatprep.subr.mxu0 0.0
    %52 = vmatpush1.msra.mxu0 %v35
    %53 = vmatprep.subr.mxu0 0.0
    %54 = vmatpush1.msra.mxu0 %v36
    %55 = vmatprep.subr.mxu0 0.0
    %56 = vmatpush1.msra.mxu0 %v37
    %57 = vmatprep.subr.mxu0 0.0
    %58 = vmatpush1.msra.mxu0 %v38
    %59 = vmatprep.subr.mxu0 0.0
    %60 = vmatpush1.msra.mxu0 %v39
    %61 = vmatprep.subr.mxu0 0.0
    %62 = vmatpush1.msra.mxu0 %v40
    %63 = vmatprep.subr.mxu0 0.0
    %64 = vmatpush1.msra.mxu0 %v41
    %65 = vmatprep.subr.mxu0 0.0
    %66 = vmatpush1.msra.mxu0 %v42
    %67 = vmatprep.subr.mxu0 0.0
    %68 = vmatpush1.msra.mxu0 %v43
    %69 = vmatprep.subr.mxu0 0.0
    %70 = vmatpush1.msra.mxu0 %v44
    %71 = vmatprep.subr.mxu0 0.0
    %72 = vmatpush1.msra.mxu0 %v45
    %73 = vmatprep.subr.mxu0 0.0
    %74 = vmatpush1.msra.mxu0 %v46
    %75 = vmatprep.subr.mxu0 0.0
    %76 = vmatpush1.msra.mxu0 %v47
    %77 = vmatprep.subr.mxu0 0.0
    %78 = vmatpush1.msra.mxu0 %v48
    %79 = vmatprep.subr.mxu0 0.0
    %80 = vmatpush1.msra.mxu0 %v49
    %81 = vmatprep.subr.mxu0 0.0
    %82 = vmatpush1.msra.mxu0 %v50
    %83 = vmatprep.subr.mxu0 0.0
    %84 = vmatpush1.msra.mxu0 0.0
    %85 = vmatprep.subr.mxu0 0.0
    %86 = vmatpush1.msra.mxu0 0.0
    %87 = vmatprep.subr.mxu0 0.0
    %88 = vmatpush1.msra.mxu0 0.0
    %89 = vmatprep.subr.mxu0 0.0
    %90 = vmatpush1.msra.mxu0 0.0
    %91 = vmatprep.subr.mxu0 0.0
    %92 = vmatpush1.msra.mxu0 0.0
    %93 = vmatprep.subr.mxu0 0.0
    %94 = vmatpush1.msra.mxu0 0.0
    %95 = vmatprep.subr.mxu0 0.0
    %96 = vmatpush1.msra.mxu0 0.0
    %97 = vmatprep.subr.mxu0 0.0
    %98 = vmatpush1.msra.mxu0 0.0
    %99 = vmatprep.subr.mxu0 0.0
    %100 = vmatpush1.msra.mxu0 0.0
    %101 = vmatprep.subr.mxu0 0.0
    %102 = vmatpush1.msra.mxu0 0.0
    %103 = vmatprep.subr.mxu0 0.0
    %104 = vmatpush1.msra.mxu0 0.0
    %105 = vmatprep.subr.mxu0 0.0
    %106 = vmatpush1.msra.mxu0 0.0
    %107 = vmatprep.subr.mxu0 0.0
    %108 = vmatpush1.msra.mxu0 0.0
    %109 = vmatprep.subr.mxu0 0.0
    %110 = vmatpush1.msra.mxu0 0.0
    %111 = vmatprep.subr.mxu0 0.0
    %112 = vmatpush1.msra.mxu0 0.0
    %113 = vmatprep.subr.mxu0 0.0
    %114 = vmatpush1.msra.mxu0 0.0
    %115 = vmatprep.mubr.f32.mxu0 0.0
    %116 = vmatmul.mubr.f32.gmra.mrb[0].mxu0 %v34
    %v117 = vpop.f32.mrb[0].mxu0
    %v118 = vadd.f32 0.0, %v117
    %v119 = vpop.f32.mrb[0].mxu0
    %120 = vdwg.mxu0
    %121 = vst [vmem:[#allocation5] sm:$0xff] %v118
    // Predicated region
    $region14: #{tpu_custom_call.1} parent=1 // pred_check
      _
    $region15: #{tpu_custom_call.1} parent=1 // pred_check_branch
      %123 = sbr.rel (0) target = $region17
    $region16: #{tpu_custom_call.1} parent=1 // pred_region
      %s125 = ssub.s32 128, 128
      %126 = vsyncadd [#allocation4], %s125
      %s128 = sshll.u32 [#allocation5], 4
      %s129 = int_to_ptr.vmem [resolvable:$true] %s128
      %131 = dma.vmem_to_hbm [thread:$0]  %s129, 128, %s2, [#allocation4]
    $region17: #{tpu_custom_call.1} parent=1 // pred_fallthru
      _
    // Predicated region
    $region18: #{tpu_custom_call.1} parent=1 // pred_check
      _
    $region19: #{tpu_custom_call.1} parent=1 // pred_check_branch
      %133 = sbr.rel (0) target = $region21
    $region20: #{tpu_custom_call.1} parent=1 // pred_region
      %134 = dma.done [#allocation4], 128
    $region21: #{tpu_custom_call.1} parent=1 // pred_fallthru
      _
    %135 = vsyncpa [#allocation3], 1
    %136 = vsyncpa [#allocation4], 1

</llo_original>
